<compile_context>
chip_gen: v7x
topology: tpu7x:2x2x1
jax: 0.10.0
libtpu: 0.0.40
codegen_flags: <defaults>
</compile_context>

<pallas_src>
import functools

import jax
import jax.numpy as jnp
from jax.experimental import pallas as pl
from jax.experimental.pallas import tpu as pltpu

B, D, HP, H = 8, 32, 16, 64     # batch, feature dim, per-model param dim, MLP hidden


def _round_up(a, b):
    return (a + b - 1) // b * b


# ---- packed weight-slab layout (row offsets, all 8-sublane aligned) ----------
R_W1X = 0                         # rows [0, D)        : W1x   (D,  H)
R_W1P = D                         # rows [D, D+HP)     : W1p   (HP, H)
R_W2 = _round_up(D + HP, 8)       # rows [48, 48+H)    : W2    (H, 2D)
R_B1 = _round_up(R_W2 + H, 8)     # row   112          : b1    (1,  H)
R_B2 = R_B1 + 8                   # row   120          : b2    (1, 2D)
SLAB_ROWS = _round_up(R_B2 + 1, 8)        # 128 rows per MLP section
SLAB_LANES = max(H, 2 * D)                # 64 lanes


def pack_mlp_weights(w1x, w1p, b1, w2, b2):
    """Pack one 2-layer conditioner MLP into a (SLAB_ROWS, SLAB_LANES) slab."""
    slab = jnp.zeros((SLAB_ROWS, SLAB_LANES), jnp.float32)
    slab = slab.at[R_W1X:R_W1X + D, :H].set(w1x)
    slab = slab.at[R_W1P:R_W1P + HP, :H].set(w1p)
    slab = slab.at[R_W2:R_W2 + H, :2 * D].set(w2)
    slab = slab.at[R_B1:R_B1 + 1, :H].set(b1)
    slab = slab.at[R_B2:R_B2 + 1, :2 * D].set(b2)
    return slab


def pack_layer_weights(weights):
    """(ew1x, ew1p, eb1, ew2, eb2, dw1x, dw1p, db1, dw2, db2) -> (2*SLAB_ROWS, SLAB_LANES)."""
    return jnp.concatenate([pack_mlp_weights(*weights[:5]),
                            pack_mlp_weights(*weights[5:])], axis=0)


# ---- kernel ------------------------------------------------------------------
def _augmented_kernel(x_ref, e_ref, w_ref, ep_ref, dp_ref, sc_ref,
                      x_out_ref, z_out_ref, lp_out_ref, *, sample):
    l = pl.program_id(0)

    @pl.when(l == 0)
    def _init():
        # Output blocks have a constant index map -> they stay resident in VMEM
        # across the whole layer grid and serve as the (x, e, log_prob) carry.
        x_out_ref[...] = x_ref[...]
        z_out_ref[...] = e_ref[...]
        lp_out_ref[...] = jnp.zeros_like(lp_out_ref)

    x = x_out_ref[...]
    e = z_out_ref[...]

    enc_scale = sc_ref[:, 0:1]
    dec_scale = sc_ref[:, 1:2]
    enc_se, enc_inv = jnp.exp(enc_scale), jnp.exp(-enc_scale)   # no divides (EUP)
    dec_se, dec_inv = jnp.exp(dec_scale), jnp.exp(-dec_scale)

    EB, DB = 0, SLAB_ROWS      # enc / dec section base rows in the packed slab

    def pcontrib(p, base):
        w1p = w_ref[base + R_W1P: base + R_W1P + HP, :H]
        b1 = w_ref[base + R_B1: base + R_B1 + 1, :H]
        return jnp.dot(p, w1p, preferred_element_type=jnp.float32) + b1

    def mlp(xin, pc, base):
        w1x = w_ref[base + R_W1X: base + R_W1X + D, :H]
        w2 = w_ref[base + R_W2: base + R_W2 + H, :2 * D]
        b2 = w_ref[base + R_B2: base + R_B2 + 1, :2 * D]
        h = jnp.tanh(jnp.dot(xin, w1x, preferred_element_type=jnp.float32) + pc)
        return jnp.dot(h, w2, preferred_element_type=jnp.float32) + b2

    # Param-path contributions of BOTH MLPs are independent of the coupling
    # chain; compute them up front so the second MLP's matmul work overlaps the
    # first MLP's tanh/exp (EUP) work.
    enc_pc = pcontrib(ep_ref[...], EB)
    dec_pc = pcontrib(dp_ref[...], DB)

    if not sample:
        st = mlp(x, enc_pc, EB)
        s, t = st[:, :D], st[:, D:]
        s = jnp.tanh(s * enc_inv) * enc_se
        z = jnp.exp(s) * e + t
        lp = jnp.sum(s, axis=-1, keepdims=True)

        st = mlp(z, dec_pc, DB)
        s, t = st[:, :D], st[:, D:]
        s = jnp.tanh(s * dec_inv) * dec_se
        x_new = x * jnp.exp(s) + t
        lp = lp + jnp.sum(s, axis=-1, keepdims=True)
    else:
        st = mlp(e, dec_pc, DB)
        s, t = st[:, :D], st[:, D:]
        s = jnp.tanh(s * enc_inv) * enc_se   # NOTE: reference swaps the scales here
        x_new = jnp.exp(-s) * (x - t)
        lp = -jnp.sum(s, axis=-1, keepdims=True)

        st = mlp(x_new, enc_pc, EB)
        s, t = st[:, :D], st[:, D:]
        s = jnp.tanh(s * dec_inv) * dec_se
        z = jnp.exp(-s) * (e - t)
        lp = lp - jnp.sum(s, axis=-1, keepdims=True)

    x_out_ref[...] = x_new
    z_out_ref[...] = z
    lp_out_ref[...] = lp_out_ref[...] + lp


# ---- wrappers ----------------------------------------------------------------
def augmented_flow(x, e, params, wslabs, sample=False):
    """Fused stack of L AugmentedLayerParam layers in ONE pallas_call.

    params : [L, B, 2*HP + 2]   per-layer conditioning params
    wslabs : [L, 2*SLAB_ROWS, SLAB_LANES]  packed once at init (pack_layer_weights)

    Layer l consumes (x, e) and produces (x', z); (x', z) feed layer l+1 and the
    per-layer log-probs accumulate. L == 1 is exactly the PyTorch module forward.
    """
    L = wslabs.shape[0]
    Bn, Dn = x.shape
    enc_p = params[..., :HP]
    dec_p = params[..., HP:2 * HP]
    scales = params[..., 2 * HP:2 * HP + 2]

    flops = int(2 * 2 * L * Bn * (D * H + HP * H + H * 2 * D))
    transc = int(L * Bn * (2 * H + 6 * D + 8))
    bytes_acc = int(4 * (wslabs.size + params.size + 4 * x.size + Bn))

    grid_spec = pltpu.PrefetchScalarGridSpec(
        num_scalar_prefetch=0,
        grid=(L,),
        in_specs=[
            pl.BlockSpec((Bn, Dn), lambda l: (0, 0)),                           # x (resident)
            pl.BlockSpec((Bn, Dn), lambda l: (0, 0)),                           # e (resident)
            pl.BlockSpec((None, 2 * SLAB_ROWS, SLAB_LANES), lambda l: (l, 0, 0)),  # packed weights
            pl.BlockSpec((None, Bn, HP), lambda l: (l, 0, 0)),                  # enc_param
            pl.BlockSpec((None, Bn, HP), lambda l: (l, 0, 0)),                  # dec_param
            pl.BlockSpec((None, Bn, 2), lambda l: (l, 0, 0)),                   # scales
        ],
        out_specs=(
            pl.BlockSpec((Bn, Dn), lambda l: (0, 0)),   # x carry / final x
            pl.BlockSpec((Bn, Dn), lambda l: (0, 0)),   # e carry / final z
            pl.BlockSpec((Bn, 1), lambda l: (0, 0)),    # accumulated log_prob
        ),
    )
    return pl.pallas_call(
        functools.partial(_augmented_kernel, sample=sample),
        out_shape=(jax.ShapeDtypeStruct((Bn, Dn), jnp.float32),
                   jax.ShapeDtypeStruct((Bn, Dn), jnp.float32),
                   jax.ShapeDtypeStruct((Bn, 1), jnp.float32)),
        grid_spec=grid_spec,
        compiler_params=pltpu.CompilerParams(dimension_semantics=("arbitrary",)),
        cost_estimate=pl.CostEstimate(flops=flops, transcendentals=transc,
                                      bytes_accessed=bytes_acc),
    )(x, e, wslabs, enc_p, dec_p, scales)


def augmented_layer_param(x, e, param, weights, sample=False):
    """Single layer -- drop-in equivalent of the PyTorch module forward.
    (In a real model, pack_layer_weights should be done once at init.)"""
    wslab = pack_layer_weights(weights)[None]
    return augmented_flow(x, e, param[None], wslab, sample=sample)


# ---- pure-JAX reference (mirrors the PyTorch forward exactly) ----------------
def _mlp_ref(x, p, w1x, w1p, b1, w2, b2):
    h = jnp.tanh(x @ w1x + p @ w1p + b1)
    return h @ w2 + b2


def reference_forward(x, e, param, weights, sample=False):
    (ew1x, ew1p, eb1, ew2, eb2, dw1x, dw1p, db1, dw2, db2) = weights
    d = x.shape[-1]
    enc_p, dec_p = jnp.split(param[..., :-2], 2, axis=-1)
    enc_scale, dec_scale = jnp.split(param[..., -2:], 2, axis=-1)
    if not sample:
        st = _mlp_ref(x, enc_p, ew1x, ew1p, eb1, ew2, eb2)
        s, t = st[..., :d], st[..., d:]
        s = jnp.tanh(s / jnp.exp(enc_scale)) * jnp.exp(enc_scale)
        z = jnp.exp(s) * e + t
        lp = jnp.sum(s, -1, keepdims=True)
        st = _mlp_ref(z, dec_p, dw1x, dw1p, db1, dw2, db2)
        s, t = st[..., :d], st[..., d:]
        s = jnp.tanh(s / jnp.exp(dec_scale)) * jnp.exp(dec_scale)
        x = x * jnp.exp(s) + t
        lp = lp + jnp.sum(s, -1, keepdims=True)
    else:
        st = _mlp_ref(e, dec_p, dw1x, dw1p, db1, dw2, db2)
        s, t = st[..., :d], st[..., d:]
        s = jnp.tanh(s / jnp.exp(enc_scale)) * jnp.exp(enc_scale)
        x = jnp.exp(-s) * (x - t)
        lp = -jnp.sum(s, -1, keepdims=True)
        st = _mlp_ref(x, enc_p, ew1x, ew1p, eb1, ew2, eb2)
        s, t = st[..., :d], st[..., d:]
        s = jnp.tanh(s / jnp.exp(dec_scale)) * jnp.exp(dec_scale)
        z = jnp.exp(-s) * (e - t)
        lp = lp - jnp.sum(s, -1, keepdims=True)
    return x, z, lp


def reference_stack(x, e, params, layer_weights, sample=False):
    lp = jnp.zeros((x.shape[0], 1), jnp.float32)
    for l in range(len(layer_weights)):
        x, z, lp_l = reference_forward(x, e, params[l], layer_weights[l], sample=sample)
        e = z
        lp = lp + lp_l
    return x, e, lp


if __name__ == "__main__":
    key = jax.random.PRNGKey(0)
    keys = jax.random.split(key, 8)

    def w(k, shape, scale=0.1):
        return scale * jax.random.normal(k, shape, jnp.float32)

    def make_layer_weights(k):
        ks = jax.random.split(k, 10)
        return (
            w(ks[0], (D, H)), w(ks[1], (HP, H)), w(ks[2], (1, H)),
            w(ks[3], (H, 2 * D)), w(ks[4], (1, 2 * D)),
            w(ks[5], (D, H)), w(ks[6], (HP, H)), w(ks[7], (1, H)),
            w(ks[8], (H, 2 * D)), w(ks[9], (1, 2 * D)),
        )

    x = jax.random.normal(keys[0], (B, D), jnp.float32)
    e = jax.random.normal(keys[1], (B, D), jnp.float32)

    ok = True

    # --- single layer: exact parity with the PyTorch module forward ----------
    param = 0.1 * jax.random.normal(keys[2], (B, 2 * HP + 2), jnp.float32)
    weights = make_layer_weights(keys[3])
    for sample in (False, True):
        got = augmented_layer_param(x, e, param, weights, sample=sample)
        jax.block_until_ready(got)
        ref = reference_forward(x, e, param, weights, sample=sample)
        for g, r in zip(got, ref):
            ok &= bool(jnp.allclose(g, r, atol=1e-4, rtol=1e-4))

    # --- fused stack of L layers in ONE gridded pallas_call -------------------
    L = 3
    params = 0.1 * jax.random.normal(keys[4], (L, B, 2 * HP + 2), jnp.float32)
    layer_weights = [make_layer_weights(k) for k in jax.random.split(keys[5], L)]
    wslabs = jnp.stack([pack_layer_weights(wl) for wl in layer_weights])  # packed once at init
    for sample in (False, True):
        got = augmented_flow(x, e, params, wslabs, sample=sample)
        jax.block_until_ready(got)
        ref = reference_stack(x, e, params, layer_weights, sample=sample)
        for g, r in zip(got, ref):
            ok &= bool(jnp.allclose(g, r, atol=1e-4, rtol=1e-4))

    print("KERNEL_OK" if ok else "MISMATCH")
</pallas_src>

<mosaic_0001>
module attributes {stable_mosaic.version = 11 : i64} {
  func.func @_augmented_kernel(%arg0: i32, %arg1: memref<8x32xf32, #tpu.memory_space<vmem>>, %arg2: memref<8x32xf32, #tpu.memory_space<vmem>>, %arg3: memref<1x256x64xf32, #tpu.memory_space<vmem>>, %arg4: memref<1x8x16xf32, #tpu.memory_space<vmem>>, %arg5: memref<1x8x16xf32, #tpu.memory_space<vmem>>, %arg6: memref<1x8x2xf32, #tpu.memory_space<vmem>>, %arg7: memref<8x32xf32, #tpu.memory_space<vmem>>, %arg8: memref<8x32xf32, #tpu.memory_space<vmem>>, %arg9: memref<8x1xf32, #tpu.memory_space<vmem>>) attributes {dimension_semantics = [#tpu.dimension_semantics<arbitrary>], iteration_bounds = array<i64: 1>, scalar_prefetch = 0 : i64, scratch_operands = 0 : i64, tpu.core_type = #tpu.core_type<tc>, window_params = [{pipeline_mode = #tpu.pipeline_mode<synchronous>, transform_indices = @transform_0, window_bounds = array<i64: 8, 32>}, {pipeline_mode = #tpu.pipeline_mode<synchronous>, transform_indices = @transform_1, window_bounds = array<i64: 8, 32>}, {transform_indices = @transform_2, window_bounds = array<i64: 1, 256, 64>}, {transform_indices = @transform_3, window_bounds = array<i64: 1, 8, 16>}, {transform_indices = @transform_4, window_bounds = array<i64: 1, 8, 16>}, {transform_indices = @transform_5, window_bounds = array<i64: 1, 8, 2>}, {pipeline_mode = #tpu.pipeline_mode<synchronous>, transform_indices = @transform_6, window_bounds = array<i64: 8, 32>}, {pipeline_mode = #tpu.pipeline_mode<synchronous>, transform_indices = @transform_7, window_bounds = array<i64: 8, 32>}, {pipeline_mode = #tpu.pipeline_mode<synchronous>, transform_indices = @transform_8, window_bounds = array<i64: 8, 1>}]} {
    %c0_i32 = arith.constant 0 : i32
    %0 = arith.cmpi eq, %arg0, %c0_i32 : i32
    %1 = arith.extui %0 : i1 to i32
    %c0_i32_0 = arith.constant 0 : i32
    %2 = arith.cmpi ne, %1, %c0_i32_0 : i32
    scf.if %2 {
      %c0_53 = arith.constant 0 : index
      %c0_54 = arith.constant 0 : index
      %89 = vector.load %arg1[%c0_53, %c0_54] : memref<8x32xf32, #tpu.memory_space<vmem>>, vector<8x32xf32>
      %c0_55 = arith.constant 0 : index
      %c0_56 = arith.constant 0 : index
      %90 = vector.load %arg7[%c0_55, %c0_56] : memref<8x32xf32, #tpu.memory_space<vmem>>, vector<8x32xf32>
      tpu.vector_store %arg7[%c0_55, %c0_56], %89 {strides = array<i32>} : memref<8x32xf32, #tpu.memory_space<vmem>>, vector<8x32xf32>,
      %c0_57 = arith.constant 0 : index
      %c0_58 = arith.constant 0 : index
      %91 = vector.load %arg2[%c0_57, %c0_58] : memref<8x32xf32, #tpu.memory_space<vmem>>, vector<8x32xf32>
      %c0_59 = arith.constant 0 : index
      %c0_60 = arith.constant 0 : index
      %92 = vector.load %arg8[%c0_59, %c0_60] : memref<8x32xf32, #tpu.memory_space<vmem>>, vector<8x32xf32>
      tpu.vector_store %arg8[%c0_59, %c0_60], %91 {strides = array<i32>} : memref<8x32xf32, #tpu.memory_space<vmem>>, vector<8x32xf32>,
      %cst_61 = arith.constant 0.000000e+00 : f32
      %93 = vector.broadcast %cst_61 : f32 to vector<8x1xf32>
      %c0_62 = arith.constant 0 : index
      %c0_63 = arith.constant 0 : index
      %94 = vector.load %arg9[%c0_62, %c0_63] : memref<8x1xf32, #tpu.memory_space<vmem>>, vector<8x1xf32>
      tpu.vector_store %arg9[%c0_62, %c0_63], %93 {strides = array<i32>} : memref<8x1xf32, #tpu.memory_space<vmem>>, vector<8x1xf32>,
    } else {
    }
    %c0 = arith.constant 0 : index
    %c0_1 = arith.constant 0 : index
    %3 = vector.load %arg7[%c0, %c0_1] : memref<8x32xf32, #tpu.memory_space<vmem>>, vector<8x32xf32>
    %c0_2 = arith.constant 0 : index
    %c0_3 = arith.constant 0 : index
    %4 = vector.load %arg8[%c0_2, %c0_3] : memref<8x32xf32, #tpu.memory_space<vmem>>, vector<8x32xf32>
    %c0_4 = arith.constant 0 : index
    %c0_5 = arith.constant 0 : index
    %c0_6 = arith.constant 0 : index
    %5 = vector.load %arg6[%c0_4, %c0_5, %c0_6] : memref<1x8x2xf32, #tpu.memory_space<vmem>>, vector<1x8x1xf32>
    %6 = vector.shape_cast %5 : vector<1x8x1xf32> to vector<8x1xf32>
    %c0_7 = arith.constant 0 : index
    %c0_8 = arith.constant 0 : index
    %c1 = arith.constant 1 : index
    %7 = vector.load %arg6[%c0_7, %c0_8, %c1] : memref<1x8x2xf32, #tpu.memory_space<vmem>>, vector<1x8x1xf32>
    %8 = vector.shape_cast %7 : vector<1x8x1xf32> to vector<8x1xf32>
    %9 = math.exp %6 : vector<8x1xf32>
    %cst = arith.constant 0.000000e+00 : f32
    %10 = vector.broadcast %cst : f32 to vector<8x1xf32>
    %11 = arith.subf %10, %6 : vector<8x1xf32>
    %12 = math.exp %11 : vector<8x1xf32>
    %13 = math.exp %8 : vector<8x1xf32>
    %cst_9 = arith.constant 0.000000e+00 : f32
    %14 = vector.broadcast %cst_9 : f32 to vector<8x1xf32>
    %15 = arith.subf %14, %8 : vector<8x1xf32>
    %16 = math.exp %15 : vector<8x1xf32>
    %c0_10 = arith.constant 0 : index
    %c0_11 = arith.constant 0 : index
    %c0_12 = arith.constant 0 : index
    %17 = vector.load %arg4[%c0_10, %c0_11, %c0_12] : memref<1x8x16xf32, #tpu.memory_space<vmem>>, vector<1x8x16xf32>
    %18 = vector.shape_cast %17 : vector<1x8x16xf32> to vector<8x16xf32>
    %c0_13 = arith.constant 0 : index
    %c32 = arith.constant 32 : index
    %c0_14 = arith.constant 0 : index
    %19 = vector.load %arg3[%c0_13, %c32, %c0_14] : memref<1x256x64xf32, #tpu.memory_space<vmem>>, vector<1x16x64xf32>
    %20 = vector.shape_cast %19 : vector<1x16x64xf32> to vector<16x64xf32>
    %c0_15 = arith.constant 0 : index
    %c112 = arith.constant 112 : index
    %c0_16 = arith.constant 0 : index
    %21 = vector.load %arg3[%c0_15, %c112, %c0_16] : memref<1x256x64xf32, #tpu.memory_space<vmem>>, vector<1x1x64xf32>
    %22 = vector.shape_cast %21 : vector<1x1x64xf32> to vector<1x64xf32>
    %cst_17 = arith.constant dense<0.000000e+00> : vector<8x64xf32>
    %23 = tpu.matmul %18, %20, %cst_17 {dimension_numbers = #tpu.dot_dimension_numbers<[1], [0], [0], [1], [0, 0, 1, 1], [], []>} : vector<8x16xf32>, vector<16x64xf32>, vector<8x64xf32> -> vector<8x64xf32>
    %24 = vector.broadcast %22 : vector<1x64xf32> to vector<8x64xf32>
    %25 = arith.addf %23, %24 : vector<8x64xf32>
    %c0_18 = arith.constant 0 : index
    %c0_19 = arith.constant 0 : index
    %c0_20 = arith.constant 0 : index
    %26 = vector.load %arg5[%c0_18, %c0_19, %c0_20] : memref<1x8x16xf32, #tpu.memory_space<vmem>>, vector<1x8x16xf32>
    %27 = vector.shape_cast %26 : vector<1x8x16xf32> to vector<8x16xf32>
    %c0_21 = arith.constant 0 : index
    %c160 = arith.constant 160 : index
    %c0_22 = arith.constant 0 : index
    %28 = vector.load %arg3[%c0_21, %c160, %c0_22] : memref<1x256x64xf32, #tpu.memory_space<vmem>>, vector<1x16x64xf32>
    %29 = vector.shape_cast %28 : vector<1x16x64xf32> to vector<16x64xf32>
    %c0_23 = arith.constant 0 : index
    %c240 = arith.constant 240 : index
    %c0_24 = arith.constant 0 : index
    %30 = vector.load %arg3[%c0_23, %c240, %c0_24] : memref<1x256x64xf32, #tpu.memory_space<vmem>>, vector<1x1x64xf32>
    %31 = vector.shape_cast %30 : vector<1x1x64xf32> to vector<1x64xf32>
    %cst_25 = arith.constant dense<0.000000e+00> : vector<8x64xf32>
    %32 = tpu.matmul %27, %29, %cst_25 {dimension_numbers = #tpu.dot_dimension_numbers<[1], [0], [0], [1], [0, 0, 1, 1], [], []>} : vector<8x16xf32>, vector<16x64xf32>, vector<8x64xf32> -> vector<8x64xf32>
    %33 = vector.broadcast %31 : vector<1x64xf32> to vector<8x64xf32>
    %34 = arith.addf %32, %33 : vector<8x64xf32>
    %c0_26 = arith.constant 0 : index
    %c0_27 = arith.constant 0 : index
    %c0_28 = arith.constant 0 : index
    %35 = vector.load %arg3[%c0_26, %c0_27, %c0_28] : memref<1x256x64xf32, #tpu.memory_space<vmem>>, vector<1x32x64xf32>
    %36 = vector.shape_cast %35 : vector<1x32x64xf32> to vector<32x64xf32>
    %c0_29 = arith.constant 0 : index
    %c48 = arith.constant 48 : index
    %c0_30 = arith.constant 0 : index
    %37 = vector.load %arg3[%c0_29, %c48, %c0_30] : memref<1x256x64xf32, #tpu.memory_space<vmem>>, vector<1x64x64xf32>
    %38 = vector.shape_cast %37 : vector<1x64x64xf32> to vector<64x64xf32>
    %c0_31 = arith.constant 0 : index
    %c120 = arith.constant 120 : index
    %c0_32 = arith.constant 0 : index
    %39 = vector.load %arg3[%c0_31, %c120, %c0_32] : memref<1x256x64xf32, #tpu.memory_space<vmem>>, vector<1x1x64xf32>
    %40 = vector.shape_cast %39 : vector<1x1x64xf32> to vector<1x64xf32>
    %cst_33 = arith.constant dense<0.000000e+00> : vector<8x64xf32>
    %41 = tpu.matmul %3, %36, %cst_33 {dimension_numbers = #tpu.dot_dimension_numbers<[1], [0], [0], [1], [0, 0, 1, 1], [], []>} : vector<8x32xf32>, vector<32x64xf32>, vector<8x64xf32> -> vector<8x64xf32>
    %42 = arith.addf %41, %25 : vector<8x64xf32>
    %43 = math.tanh %42 : vector<8x64xf32>
    %cst_34 = arith.constant dense<0.000000e+00> : vector<8x64xf32>
    %44 = tpu.matmul %43, %38, %cst_34 {dimension_numbers = #tpu.dot_dimension_numbers<[1], [0], [0], [1], [0, 0, 1, 1], [], []>} : vector<8x64xf32>, vector<64x64xf32>, vector<8x64xf32> -> vector<8x64xf32>
    %45 = vector.broadcast %40 : vector<1x64xf32> to vector<8x64xf32>
    %46 = arith.addf %44, %45 : vector<8x64xf32>
    %47 = vector.extract_strided_slice %46 {offsets = [0, 0], sizes = [8, 32], strides = [1, 1]} : vector<8x64xf32> to vector<8x32xf32>
    %48 = vector.extract_strided_slice %46 {offsets = [0, 32], sizes = [8, 32], strides = [1, 1]} : vector<8x64xf32> to vector<8x32xf32>
    %49 = vector.broadcast %12 : vector<8x1xf32> to vector<8x32xf32>
    %50 = arith.mulf %47, %49 : vector<8x32xf32>
    %51 = math.tanh %50 : vector<8x32xf32>
    %52 = vector.broadcast %9 : vector<8x1xf32> to vector<8x32xf32>
    %53 = arith.mulf %51, %52 : vector<8x32xf32>
    %54 = math.exp %53 : vector<8x32xf32>
    %55 = arith.mulf %54, %4 : vector<8x32xf32>
    %56 = arith.addf %55, %48 : vector<8x32xf32>
    %cst_35 = arith.constant dense<0.000000e+00> : vector<8xf32>
    %57 = vector.multi_reduction <add>, %53, %cst_35 [1] : vector<8x32xf32> to vector<8xf32>
    %58 = vector.shape_cast %57 : vector<8xf32> to vector<8x1xf32>
    %c0_36 = arith.constant 0 : index
    %c128 = arith.constant 128 : index
    %c0_37 = arith.constant 0 : index
    %59 = vector.load %arg3[%c0_36, %c128, %c0_37] : memref<1x256x64xf32, #tpu.memory_space<vmem>>, vector<1x32x64xf32>
    %60 = vector.shape_cast %59 : vector<1x32x64xf32> to vector<32x64xf32>
    %c0_38 = arith.constant 0 : index
    %c176 = arith.constant 176 : index
    %c0_39 = arith.constant 0 : index
    %61 = vector.load %arg3[%c0_38, %c176, %c0_39] : memref<1x256x64xf32, #tpu.memory_space<vmem>>, vector<1x64x64xf32>
    %62 = vector.shape_cast %61 : vector<1x64x64xf32> to vector<64x64xf32>
    %c0_40 = arith.constant 0 : index
    %c248 = arith.constant 248 : index
    %c0_41 = arith.constant 0 : index
    %63 = vector.load %arg3[%c0_40, %c248, %c0_41] : memref<1x256x64xf32, #tpu.memory_space<vmem>>, vector<1x1x64xf32>
    %64 = vector.shape_cast %63 : vector<1x1x64xf32> to vector<1x64xf32>
    %cst_42 = arith.constant dense<0.000000e+00> : vector<8x64xf32>
    %65 = tpu.matmul %56, %60, %cst_42 {dimension_numbers = #tpu.dot_dimension_numbers<[1], [0], [0], [1], [0, 0, 1, 1], [], []>} : vector<8x32xf32>, vector<32x64xf32>, vector<8x64xf32> -> vector<8x64xf32>
    %66 = arith.addf %65, %34 : vector<8x64xf32>
    %67 = math.tanh %66 : vector<8x64xf32>
    %cst_43 = arith.constant dense<0.000000e+00> : vector<8x64xf32>
    %68 = tpu.matmul %67, %62, %cst_43 {dimension_numbers = #tpu.dot_dimension_numbers<[1], [0], [0], [1], [0, 0, 1, 1], [], []>} : vector<8x64xf32>, vector<64x64xf32>, vector<8x64xf32> -> vector<8x64xf32>
    %69 = vector.broadcast %64 : vector<1x64xf32> to vector<8x64xf32>
    %70 = arith.addf %68, %69 : vector<8x64xf32>
    %71 = vector.extract_strided_slice %70 {offsets = [0, 0], sizes = [8, 32], strides = [1, 1]} : vector<8x64xf32> to vector<8x32xf32>
    %72 = vector.extract_strided_slice %70 {offsets = [0, 32], sizes = [8, 32], strides = [1, 1]} : vector<8x64xf32> to vector<8x32xf32>
    %73 = vector.broadcast %16 : vector<8x1xf32> to vector<8x32xf32>
    %74 = arith.mulf %71, %73 : vector<8x32xf32>
    %75 = math.tanh %74 : vector<8x32xf32>
    %76 = vector.broadcast %13 : vector<8x1xf32> to vector<8x32xf32>
    %77 = arith.mulf %75, %76 : vector<8x32xf32>
    %78 = math.exp %77 : vector<8x32xf32>
    %79 = arith.mulf %3, %78 : vector<8x32xf32>
    %80 = arith.addf %79, %72 : vector<8x32xf32>
    %cst_44 = arith.constant dense<0.000000e+00> : vector<8xf32>
    %81 = vector.multi_reduction <add>, %77, %cst_44 [1] : vector<8x32xf32> to vector<8xf32>
    %82 = vector.shape_cast %81 : vector<8xf32> to vector<8x1xf32>
    %83 = arith.addf %58, %82 : vector<8x1xf32>
    %c0_45 = arith.constant 0 : index
    %c0_46 = arith.constant 0 : index
    %84 = vector.load %arg7[%c0_45, %c0_46] : memref<8x32xf32, #tpu.memory_space<vmem>>, vector<8x32xf32>
    tpu.vector_store %arg7[%c0_45, %c0_46], %80 {strides = array<i32>} : memref<8x32xf32, #tpu.memory_space<vmem>>, vector<8x32xf32>,
    %c0_47 = arith.constant 0 : index
    %c0_48 = arith.constant 0 : index
    %85 = vector.load %arg8[%c0_47, %c0_48] : memref<8x32xf32, #tpu.memory_space<vmem>>, vector<8x32xf32>
    tpu.vector_store %arg8[%c0_47, %c0_48], %56 {strides = array<i32>} : memref<8x32xf32, #tpu.memory_space<vmem>>, vector<8x32xf32>,
    %c0_49 = arith.constant 0 : index
    %c0_50 = arith.constant 0 : index
    %86 = vector.load %arg9[%c0_49, %c0_50] : memref<8x1xf32, #tpu.memory_space<vmem>>, vector<8x1xf32>
    %87 = arith.addf %86, %83 : vector<8x1xf32>
    %c0_51 = arith.constant 0 : index
    %c0_52 = arith.constant 0 : index
    %88 = vector.load %arg9[%c0_51, %c0_52] : memref<8x1xf32, #tpu.memory_space<vmem>>, vector<8x1xf32>
    tpu.vector_store %arg9[%c0_51, %c0_52], %87 {strides = array<i32>} : memref<8x1xf32, #tpu.memory_space<vmem>>, vector<8x1xf32>,
    return
  }
  func.func @transform_0(%arg0: i32) -> (i32, i32) {
    %c0_i32 = arith.constant 0 : i32
    %c0_i32_0 = arith.constant 0 : i32
    %c0_i32_1 = arith.constant 0 : i32
    return %c0_i32, %c0_i32_0 : i32, i32
  }
  func.func @transform_1(%arg0: i32) -> (i32, i32) {
    %c0_i32 = arith.constant 0 : i32
    %c0_i32_0 = arith.constant 0 : i32
    %c0_i32_1 = arith.constant 0 : i32
    return %c0_i32, %c0_i32_0 : i32, i32
  }
  func.func @transform_2(%arg0: i32) -> (i32, i32, i32) {
    %c0_i32 = arith.constant 0 : i32
    %c0_i32_0 = arith.constant 0 : i32
    %c0_i32_1 = arith.constant 0 : i32
    return %arg0, %c0_i32, %c0_i32_0 : i32, i32, i32
  }
  func.func @transform_3(%arg0: i32) -> (i32, i32, i32) {
    %c0_i32 = arith.constant 0 : i32
    %c0_i32_0 = arith.constant 0 : i32
    %c0_i32_1 = arith.constant 0 : i32
    return %arg0, %c0_i32, %c0_i32_0 : i32, i32, i32
  }
  func.func @transform_4(%arg0: i32) -> (i32, i32, i32) {
    %c0_i32 = arith.constant 0 : i32
    %c0_i32_0 = arith.constant 0 : i32
    %c0_i32_1 = arith.constant 0 : i32
    return %arg0, %c0_i32, %c0_i32_0 : i32, i32, i32
  }
  func.func @transform_5(%arg0: i32) -> (i32, i32, i32) {
    %c0_i32 = arith.constant 0 : i32
    %c0_i32_0 = arith.constant 0 : i32
    %c0_i32_1 = arith.constant 0 : i32
    return %arg0, %c0_i32, %c0_i32_0 : i32, i32, i32
  }
  func.func @transform_6(%arg0: i32) -> (i32, i32) {
    %c0_i32 = arith.constant 0 : i32
    %c0_i32_0 = arith.constant 0 : i32
    %c0_i32_1 = arith.constant 0 : i32
    return %c0_i32, %c0_i32_0 : i32, i32
  }
  func.func @transform_7(%arg0: i32) -> (i32, i32) {
    %c0_i32 = arith.constant 0 : i32
    %c0_i32_0 = arith.constant 0 : i32
    %c0_i32_1 = arith.constant 0 : i32
    return %c0_i32, %c0_i32_0 : i32, i32
  }
  func.func @transform_8(%arg0: i32) -> (i32, i32) {
    %c0_i32 = arith.constant 0 : i32
    %c0_i32_0 = arith.constant 0 : i32
    %c0_i32_1 = arith.constant 0 : i32
    return %c0_i32, %c0_i32_0 : i32, i32
  }
}

</mosaic_0001>

<llo_original>
// kernel: tpu_custom_call.1
$region0: #{tpu_custom_call.1}
  #allocation0 [shape = 'u32[]', space=smem, size = 0x4, offset = 0x4, fixed_abs, tag = 'smem constant byte address 0x4 - core index']
  #allocation1 [shape = 'u32[144,128]{1,0:T(1,128)}', space=vmem, size = 0x12000, scoped, tag = 'internal scratch']
  %s0 = inlined_call_operand.vmem [shape: f32[8,32], index: 0, kind: input, shape index: {}]
  %s1 = inlined_call_operand.vmem [shape: f32[8,32], index: 1, kind: input, shape index: {}]
  %s2 = inlined_call_operand.vmem [shape: f32[1,256,64], index: 2, kind: input, shape index: {}]
  %s3 = inlined_call_operand.vmem [shape: f32[1,8,16], index: 3, kind: input, shape index: {}]
  %s4 = inlined_call_operand.vmem [shape: f32[1,8,16], index: 4, kind: input, shape index: {}]
  %s5 = inlined_call_operand.vmem [shape: f32[1,8,2], index: 5, kind: input, shape index: {}]
  %s6 = inlined_call_operand.hbm [shape: f32[8,32], index: 6, kind: output, shape index: {0}]
  %s7 = inlined_call_operand.hbm [shape: f32[8,32], index: 7, kind: output, shape index: {1}]
  %s8 = inlined_call_operand.vmem [shape: f32[8,1], index: 8, kind: output, shape index: {2}]
  %9 = xla_tuple %s6, %s7, %s8
  %s10 = sld [smem:[#allocation0]]
  $region54: #{tpu_custom_call.1} parent=0
    _
  %s12 = ssub.s32 1, %s10
  %s13 = scalar_select 0, %s12, %s10
  $region1: #{tpu_custom_call.1} parent=0
    #allocation2 [shape = 'u8[4096]{0}', space=vmem, size = 0x1000, scoped, tag = 'output window, operand 0, single buffered']
    #allocation3 [shape = 's32[1]{0}', space=sflag, size = 0x4, scoped, tag = 'scoped memory for tpu_custom_call.1']
    #allocation4 [shape = 'u8[4096]{0}', space=vmem, size = 0x1000, scoped, tag = 'output window, operand 1, single buffered']
    #allocation5 [shape = 's32[1]{0}', space=sflag, size = 0x4, scoped, tag = 'scoped memory for tpu_custom_call.1']
    %14 = vsyncpa [#allocation3], 0
    %15 = vsyncpa [#allocation5], 0
    // Predicated region
    $region2: #{tpu_custom_call.1} parent=1 // pred_check
      _
    $region3: #{tpu_custom_call.1} parent=1 // pred_check_branch
      %17 = sbr.rel (0) target = $region5
    $region4: #{tpu_custom_call.1} parent=1 // pred_region
      _
    $region5: #{tpu_custom_call.1} parent=1 // pred_fallthru
      _
    // Predicated region
    $region6: #{tpu_custom_call.1} parent=1 // pred_check
      _
    $region7: #{tpu_custom_call.1} parent=1 // pred_check_branch
      %19 = sbr.rel (0) target = $region9
    $region8: #{tpu_custom_call.1} parent=1 // pred_region
      _
    $region9: #{tpu_custom_call.1} parent=1 // pred_fallthru
      _
    // Predicated region
    $region10: #{tpu_custom_call.1} parent=1 // pred_check
      _
    $region11: #{tpu_custom_call.1} parent=1 // pred_check_branch
      %21 = sbr.rel (0) target = $region13
    $region12: #{tpu_custom_call.1} parent=1 // pred_region
      _
    $region13: #{tpu_custom_call.1} parent=1 // pred_fallthru
      _
    // Predicated region
    $region14: #{tpu_custom_call.1} parent=1 // pred_check
      _
    $region15: #{tpu_custom_call.1} parent=1 // pred_check_branch
      %23 = sbr.rel (0) target = $region17
    $region16: #{tpu_custom_call.1} parent=1 // pred_region
      _
    $region17: #{tpu_custom_call.1} parent=1 // pred_fallthru
      _
    // Predicated region
    $region18: #{tpu_custom_call.1} parent=1 // pred_check
      _
    $region19: #{tpu_custom_call.1} parent=1 // pred_check_branch
      %25 = sbr.rel (0) target = $region21
    $region20: #{tpu_custom_call.1} parent=1 // pred_region
      _
    $region21: #{tpu_custom_call.1} parent=1 // pred_fallthru
      _
    // Predicated region
    $region22: #{tpu_custom_call.1} parent=1 // pred_check
      _
    $region23: #{tpu_custom_call.1} parent=1 // pred_check_branch
      %27 = sbr.rel (0) target = $region25
    $region24: #{tpu_custom_call.1} parent=1 // pred_region
      _
    $region25: #{tpu_custom_call.1} parent=1 // pred_fallthru
      _
    %p28 = scmp.eq.s32.totalorder 0, 0
    // Predicated region
    $region26: #{tpu_custom_call.1} parent=1 // pred_check
      %p29 = pneg %p28
    $region27: #{tpu_custom_call.1} parent=1 // pred_check_branch
      %31 = sbr.rel (%p29) target = $region29
    $region28: #{tpu_custom_call.1} parent=1 // pred_region
      %v32 = vld [vmem:[%s0] sm:$0xff]
      %vm33 = vcmask 261120
      %34 = vst.msk [vmem:[#allocation2] sm:$0xff] %vm33, %v32
      %v35 = vld [vmem:[%s1] sm:$0xff]
      %36 = vst.msk [vmem:[#allocation4] sm:$0xff] %vm33, %v35
      %vm37 = vcmask 7168
      %38 = vst.msk [vmem:[%s8] sm:$0xff] %vm37, 0.0
    $region29: #{tpu_custom_call.1} parent=1 // pred_fallthru
      _
    %v39 = vld [vmem:[#allocation2] sm:$0xff]
    %v40 = vld [vmem:[#allocation4] sm:$0xff]
    %v41 = vld [vmem:[%s5] sm:$0xff]
    %v42 = vmul.f32 %v41, 1.442695
    %v43 = vpow.pop %v42
    %v44 = vsub.f32 0.0, %v41
    %v45 = vmul.f32 %v44, 1.442695
    %v46 = vpow.pop %v45
    %v47 = vld [vmem:[%s3] sm:$0xff]
    %v48 = vld [vmem:[%s2 + $0x20] sm:$0xff]
    %v49 = vld [vmem:[%s2 + $0x28] sm:$0xff]
    %v50 = vld [vmem:[%s2 + $0x70] sm:$0x1]
    %v51 = vlaneseq
    %v52 = vshrl.u32 %v51, 7
    %v53 = vsub.s32 0, %v52
    %v54 = vrot.slane %v50, %v53
    %vm55 = vcmask 130048
    %v57 = vsel %vm55, %v47, 0
    %59 = vmatprep.subr.mxu0 0.0
    %60 = vmatpush1.msra.mxu0 %v48
    %61 = vmatprep.subr.mxu0 0.0
    %62 = vmatpush1.msra.mxu0 %v49
    %63 = vmatprep.subr.mxu0 0.0
    %64 = vmatpush1.msra.mxu0 0.0
    %65 = vmatprep.subr.mxu0 0.0
    %66 = vmatpush1.msra.mxu0 0.0
    %67 = vmatprep.subr.mxu0 0.0
    %68 = vmatpush1.msra.mxu0 0.0
    %69 = vmatprep.subr.mxu0 0.0
    %70 = vmatpush1.msra.mxu0 0.0
    %71 = vmatprep.subr.mxu0 0.0
    %72 = vmatpush1.msra.mxu0 0.0
    %73 = vmatprep.subr.mxu0 0.0
    %74 = vmatpush1.msra.mxu0 0.0
    %75 = vmatprep.subr.mxu0 0.0
    %76 = vmatpush1.msra.mxu0 0.0
    %77 = vmatprep.subr.mxu0 0.0
    %78 = vmatpush1.msra.mxu0 0.0
    %79 = vmatprep.subr.mxu0 0.0
    %80 = vmatpush1.msra.mxu0 0.0
    %81 = vmatprep.subr.mxu0 0.0
    %82 = vmatpush1.msra.mxu0 0.0
    %83 = vmatprep.subr.mxu0 0.0
    %84 = vmatpush1.msra.mxu0 0.0
    %85 = vmatprep.subr.mxu0 0.0
    %86 = vmatpush1.msra.mxu0 0.0
    %87 = vmatprep.subr.mxu0 0.0
    %88 = vmatpush1.msra.mxu0 0.0
    %89 = vmatprep.subr.mxu0 0.0
    %90 = vmatpush1.msra.mxu0 0.0
    %91 = vmatprep.subr.mxu0 0.0
    %92 = vmatpush1.msra.mxu0 0.0
    %93 = vmatprep.subr.mxu0 0.0
    %94 = vmatpush1.msra.mxu0 0.0
    %95 = vmatprep.subr.mxu0 0.0
    %96 = vmatpush1.msra.mxu0 0.0
    %97 = vmatprep.subr.mxu0 0.0
    %98 = vmatpush1.msra.mxu0 0.0
    %99 = vmatprep.subr.mxu0 0.0
    %100 = vmatpush1.msra.mxu0 0.0
    %101 = vmatprep.subr.mxu0 0.0
    %102 = vmatpush1.msra.mxu0 0.0
    %103 = vmatprep.subr.mxu0 0.0
    %104 = vmatpush1.msra.mxu0 0.0
    %105 = vmatprep.subr.mxu0 0.0
    %106 = vmatpush1.msra.mxu0 0.0
    %107 = vmatprep.subr.mxu0 0.0
    %108 = vmatpush1.msra.mxu0 0.0
    %109 = vmatprep.subr.mxu0 0.0
    %110 = vmatpush1.msra.mxu0 0.0
    %111 = vmatprep.subr.mxu0 0.0
    %112 = vmatpush1.msra.mxu0 0.0
    %113 = vmatprep.subr.mxu0 0.0
    %114 = vmatpush1.msra.mxu0 0.0
    %115 = vmatprep.subr.mxu0 0.0
    %116 = vmatpush1.msra.mxu0 0.0
    %117 = vmatprep.subr.mxu0 0.0
    %118 = vmatpush1.msra.mxu0 0.0
    %119 = vmatprep.subr.mxu0 0.0
    %120 = vmatpush1.msra.mxu0 0.0
    %121 = vmatprep.subr.mxu0 0.0
    %122 = vmatpush1.msra.mxu0 0.0
    %123 = vmatprep.mubr.f32.mxu0 0.0
    %124 = vmatmul.mubr.f32.gmra.mrb[0].mxu0 %v57
    %v125 = vpop.f32.mrb[0].mxu0
    %v126 = vadd.f32 %v54, %v125
    %v127 = vpop.f32.mrb[0].mxu0
    %128 = vdwg.mxu0
    %v129 = vld [vmem:[%s4] sm:$0xff]
    %v130 = vld [vmem:[%s2 + $0xa0] sm:$0xff]
    %v131 = vld [vmem:[%s2 + $0xa8] sm:$0xff]
    %v132 = vld [vmem:[%s2 + $0xf0] sm:$0x1]
    %v133 = vlaneseq
    %v134 = vshrl.u32 %v133, 7
    %v135 = vsub.s32 0, %v134
    %v136 = vrot.slane %v132, %v135
    %v138 = vsel %vm55, %v129, 0
    %140 = vmatprep.subr.mxu0 0.0
    %141 = vmatpush1.msra.mxu0 %v130
    %142 = vmatprep.subr.mxu0 0.0
    %143 = vmatpush1.msra.mxu0 %v131
    %144 = vmatprep.subr.mxu0 0.0
    %145 = vmatpush1.msra.mxu0 0.0
    %146 = vmatprep.subr.mxu0 0.0
    %147 = vmatpush1.msra.mxu0 0.0
    %148 = vmatprep.subr.mxu0 0.0
    %149 = vmatpush1.msra.mxu0 0.0
    %150 = vmatprep.subr.mxu0 0.0
    %151 = vmatpush1.msra.mxu0 0.0
    %152 = vmatprep.subr.mxu0 0.0
    %153 = vmatpush1.msra.mxu0 0.0
    %154 = vmatprep.subr.mxu0 0.0
    %155 = vmatpush1.msra.mxu0 0.0
    %156 = vmatprep.subr.mxu0 0.0
    %157 = vmatpush1.msra.mxu0 0.0
    %158 = vmatprep.subr.mxu0 0.0
    %159 = vmatpush1.msra.mxu0 0.0
    %160 = vmatprep.subr.mxu0 0.0
    %161 = vmatpush1.msra.mxu0 0.0
    %162 = vmatprep.subr.mxu0 0.0
    %163 = vmatpush1.msra.mxu0 0.0
    %164 = vmatprep.subr.mxu0 0.0
    %165 = vmatpush1.msra.mxu0 0.0
    %166 = vmatprep.subr.mxu0 0.0
    %167 = vmatpush1.msra.mxu0 0.0
    %168 = vmatprep.subr.mxu0 0.0
    %169 = vmatpush1.msra.mxu0 0.0
    %170 = vmatprep.subr.mxu0 0.0
    %171 = vmatpush1.msra.mxu0 0.0
    %172 = vmatprep.subr.mxu0 0.0
    %173 = vmatpush1.msra.mxu0 0.0
    %174 = vmatprep.subr.mxu0 0.0
    %175 = vmatpush1.msra.mxu0 0.0
    %176 = vmatprep.subr.mxu0 0.0
    %177 = vmatpush1.msra.mxu0 0.0
    %178 = vmatprep.subr.mxu0 0.0
    %179 = vmatpush1.msra.mxu0 0.0
    %180 = vmatprep.subr.mxu0 0.0
    %181 = vmatpush1.msra.mxu0 0.0
    %182 = vmatprep.subr.mxu0 0.0
    %183 = vmatpush1.msra.mxu0 0.0
    %184 = vmatprep.subr.mxu0 0.0
    %185 = vmatpush1.msra.mxu0 0.0
    %186 = vmatprep.subr.mxu0 0.0
    %187 = vmatpush1.msra.mxu0 0.0
    %188 = vmatprep.subr.mxu0 0.0
    %189 = vmatpush1.msra.mxu0 0.0
    %190 = vmatprep.subr.mxu0 0.0
    %191 = vmatpush1.msra.mxu0 0.0
    %192 = vmatprep.subr.mxu0 0.0
    %193 = vmatpush1.msra.mxu0 0.0
    %194 = vmatprep.subr.mxu0 0.0
    %195 = vmatpush1.msra.mxu0 0.0
    %196 = vmatprep.subr.mxu0 0.0
    %197 = vmatpush1.msra.mxu0 0.0
    %198 = vmatprep.subr.mxu0 0.0
    %199 = vmatpush1.msra.mxu0 0.0
    %200 = vmatprep.subr.mxu0 0.0
    %201 = vmatpush1.msra.mxu0 0.0
    %202 = vmatprep.subr.mxu0 0.0
    %203 = vmatpush1.msra.mxu0 0.0
    %204 = vmatprep.mubr.f32.mxu0 0.0
    %205 = vmatmul.mubr.f32.gmra.mrb[0].mxu0 %v138
    %v206 = vpop.f32.mrb[0].mxu0
    %v207 = vadd.f32 %v136, %v206
    %v208 = vpop.f32.mrb[0].mxu0
    %209 = vdwg.mxu0
    %v210 = vld [vmem:[%s2] sm:$0xff]
    %v211 = vld [vmem:[%s2 + $0x8] sm:$0xff]
    %v212 = vld [vmem:[%s2 + $0x10] sm:$0xff]
    %v213 = vld [vmem:[%s2 + $0x18] sm:$0xff]
    %v214 = vld [vmem:[%s2 + $0x30] sm:$0xff]
    %v215 = vld [vmem:[%s2 + $0x38] sm:$0xff]
    %v216 = vld [vmem:[%s2 + $0x40] sm:$0xff]
    %v217 = vld [vmem:[%s2 + $0x48] sm:$0xff]
    %v218 = vld [vmem:[%s2 + $0x50] sm:$0xff]
    %v219 = vld [vmem:[%s2 + $0x58] sm:$0xff]
    %v220 = vld [vmem:[%s2 + $0x60] sm:$0xff]
    %v221 = vld [vmem:[%s2 + $0x68] sm:$0xff]
    %v222 = vld [vmem:[%s2 + $0x78] sm:$0x1]
    %vm223 = vcmask 261120
    %v225 = vsel %vm223, %v39, 0
    %227 = vmatprep.subr.mxu0 0.0
    %228 = vmatpush1.msra.mxu0 %v210
    %229 = vmatprep.subr.mxu0 0.0
    %230 = vmatpush1.msra.mxu0 %v211
    %231 = vmatprep.subr.mxu0 0.0
    %232 = vmatpush1.msra.mxu0 %v212
    %233 = vmatprep.subr.mxu0 0.0
    %234 = vmatpush1.msra.mxu0 %v213
    %235 = vmatprep.subr.mxu0 0.0
    %236 = vmatpush1.msra.mxu0 0.0
    %237 = vmatprep.subr.mxu0 0.0
    %238 = vmatpush1.msra.mxu0 0.0
    %239 = vmatprep.subr.mxu0 0.0
    %240 = vmatpush1.msra.mxu0 0.0
    %241 = vmatprep.subr.mxu0 0.0
    %242 = vmatpush1.msra.mxu0 0.0
    %243 = vmatprep.subr.mxu0 0.0
    %244 = vmatpush1.msra.mxu0 0.0
    %245 = vmatprep.subr.mxu0 0.0
    %246 = vmatpush1.msra.mxu0 0.0
    %247 = vmatprep.subr.mxu0 0.0
    %248 = vmatpush1.msra.mxu0 0.0
    %249 = vmatprep.subr.mxu0 0.0
    %250 = vmatpush1.msra.mxu0 0.0
    %251 = vmatprep.subr.mxu0 0.0
    %252 = vmatpush1.msra.mxu0 0.0
    %253 = vmatprep.subr.mxu0 0.0
    %254 = vmatpush1.msra.mxu0 0.0
    %255 = vmatprep.subr.mxu0 0.0
    %256 = vmatpush1.msra.mxu0 0.0
    %257 = vmatprep.subr.mxu0 0.0
    %258 = vmatpush1.msra.mxu0 0.0
    %259 = vmatprep.subr.mxu0 0.0
    %260 = vmatpush1.msra.mxu0 0.0
    %261 = vmatprep.subr.mxu0 0.0
    %262 = vmatpush1.msra.mxu0 0.0
    %263 = vmatprep.subr.mxu0 0.0
    %264 = vmatpush1.msra.mxu0 0.0
    %265 = vmatprep.subr.mxu0 0.0
    %266 = vmatpush1.msra.mxu0 0.0
    %267 = vmatprep.subr.mxu0 0.0
    %268 = vmatpush1.msra.mxu0 0.0
    %269 = vmatprep.subr.mxu0 0.0
    %270 = vmatpush1.msra.mxu0 0.0
    %271 = vmatprep.subr.mxu0 0.0
    %272 = vmatpush1.msra.mxu0 0.0
    %273 = vmatprep.subr.mxu0 0.0
    %274 = vmatpush1.msra.mxu0 0.0
    %275 = vmatprep.subr.mxu0 0.0
    %276 = vmatpush1.msra.mxu0 0.0
    %277 = vmatprep.subr.mxu0 0.0
    %278 = vmatpush1.msra.mxu0 0.0
    %279 = vmatprep.subr.mxu0 0.0
    %280 = vmatpush1.msra.mxu0 0.0
    %281 = vmatprep.subr.mxu0 0.0
    %282 = vmatpush1.msra.mxu0 0.0
    %283 = vmatprep.subr.mxu0 0.0
    %284 = vmatpush1.msra.mxu0 0.0
    %285 = vmatprep.subr.mxu0 0.0
    %286 = vmatpush1.msra.mxu0 0.0
    %287 = vmatprep.subr.mxu0 0.0
    %288 = vmatpush1.msra.mxu0 0.0
    %289 = vmatprep.subr.mxu0 0.0
    %290 = vmatpush1.msra.mxu0 0.0
    %291 = vmatprep.mubr.f32.mxu0 0.0
    %292 = vmatmul.mubr.f32.gmra.mrb[0].mxu0 %v225
    %v293 = vpop.f32.mrb[0].mxu0
    %v294 = vadd.f32 %v126, %v293
    %v295 = vpop.f32.mrb[0].mxu0
    %296 = vdwg.mxu0
    %v297 = vtanh.pop %v294
    %v298 = vlaneseq
    %v299 = vshrl.u32 %v298, 7
    %v300 = vsub.s32 0, %v299
    %v301 = vrot.slane %v222, %v300
    %vm302 = vcmask 523264
    %v304 = vsel %vm302, %v297, 0
    %306 = vmatprep.subr.mxu0 0.0
    %307 = vmatpush1.msra.mxu0 %v214
    %308 = vmatprep.subr.mxu0 0.0
    %309 = vmatpush1.msra.mxu0 %v215
    %310 = vmatprep.subr.mxu0 0.0
    %311 = vmatpush1.msra.mxu0 %v216
    %312 = vmatprep.subr.mxu0 0.0
    %313 = vmatpush1.msra.mxu0 %v217
    %314 = vmatprep.subr.mxu0 0.0
    %315 = vmatpush1.msra.mxu0 %v218
    %316 = vmatprep.subr.mxu0 0.0
    %317 = vmatpush1.msra.mxu0 %v219
    %318 = vmatprep.subr.mxu0 0.0
    %319 = vmatpush1.msra.mxu0 %v220
    %320 = vmatprep.subr.mxu0 0.0
    %321 = vmatpush1.msra.mxu0 %v221
    %322 = vmatprep.subr.mxu0 0.0
    %323 = vmatpush1.msra.mxu0 0.0
    %324 = vmatprep.subr.mxu0 0.0
    %325 = vmatpush1.msra.mxu0 0.0
    %326 = vmatprep.subr.mxu0 0.0
    %327 = vmatpush1.msra.mxu0 0.0
    %328 = vmatprep.subr.mxu0 0.0
    %329 = vmatpush1.msra.mxu0 0.0
    %330 = vmatprep.subr.mxu0 0.0
    %331 = vmatpush1.msra.mxu0 0.0
    %332 = vmatprep.subr.mxu0 0.0
    %333 = vmatpush1.msra.mxu0 0.0
    %334 = vmatprep.subr.mxu0 0.0
    %335 = vmatpush1.msra.mxu0 0.0
    %336 = vmatprep.subr.mxu0 0.0
    %337 = vmatpush1.msra.mxu0 0.0
    %338 = vmatprep.subr.mxu0 0.0
    %339 = vmatpush1.msra.mxu0 0.0
    %340 = vmatprep.subr.mxu0 0.0
    %341 = vmatpush1.msra.mxu0 0.0
    %342 = vmatprep.subr.mxu0 0.0
    %343 = vmatpush1.msra.mxu0 0.0
    %344 = vmatprep.subr.mxu0 0.0
    %345 = vmatpush1.msra.mxu0 0.0
    %346 = vmatprep.subr.mxu0 0.0
    %347 = vmatpush1.msra.mxu0 0.0
    %348 = vmatprep.subr.mxu0 0.0
    %349 = vmatpush1.msra.mxu0 0.0
    %350 = vmatprep.subr.mxu0 0.0
    %351 = vmatpush1.msra.mxu0 0.0
    %352 = vmatprep.subr.mxu0 0.0
    %353 = vmatpush1.msra.mxu0 0.0
    %354 = vmatprep.subr.mxu0 0.0
    %355 = vmatpush1.msra.mxu0 0.0
    %356 = vmatprep.subr.mxu0 0.0
    %357 = vmatpush1.msra.mxu0 0.0
    %358 = vmatprep.subr.mxu0 0.0
    %359 = vmatpush1.msra.mxu0 0.0
    %360 = vmatprep.subr.mxu0 0.0
    %361 = vmatpush1.msra.mxu0 0.0
    %362 = vmatprep.subr.mxu0 0.0
    %363 = vmatpush1.msra.mxu0 0.0
    %364 = vmatprep.subr.mxu0 0.0
    %365 = vmatpush1.msra.mxu0 0.0
    %366 = vmatprep.subr.mxu0 0.0
    %367 = vmatpush1.msra.mxu0 0.0
    %368 = vmatprep.subr.mxu0 0.0
    %369 = vmatpush1.msra.mxu0 0.0
    %370 = vmatprep.mubr.f32.mxu0 0.0
    %371 = vmatmul.mubr.f32.gmra.mrb[0].mxu0 %v304
    %v372 = vpop.f32.mrb[0].mxu0
    %v373 = vadd.f32 %v301, %v372
    %v374 = vpop.f32.mrb[0].mxu0
    %375 = vdwg.mxu0
    %377 = vset.pattern.permute.xlu0 0
    %378 = vperm.xlu0 %377, %v46
    %v379 = vpop.permute.xlu0 %378
    %v381 = vmul.f32 %v373, %v379
    %v382 = vtanh.pop %v381
    %384 = vset.pattern.permute.xlu0 0
    %385 = vperm.xlu0 %384, %v43
    %v386 = vpop.permute.xlu0 %385
    %v388 = vmul.f32 %v382, %v386
    %v389 = vmul.f32 %v388, 1.442695
    %v390 = vpow.pop %v389
    %v391 = vmul.f32 %v390, %v40
    %393 = vrot.lane.b32.xlu0 %v373, 96
    %v394 = vpop.permute.xlu0 %393
    %v396 = vadd.f32 %v391, %v394
    %v397 = vsel %vm223, %v388, 0.0
    %398 = vadd.xlane.f32.xlu0 %v397
    %v399 = vpop.xlane.xlu0 %398
    %v400 = vld [vmem:[%s2 + $0x80] sm:$0xff]
    %v401 = vld [vmem:[%s2 + $0x88] sm:$0xff]
    %v402 = vld [vmem:[%s2 + $0x90] sm:$0xff]
    %v403 = vld [vmem:[%s2 + $0x98] sm:$0xff]
    %v404 = vld [vmem:[%s2 + $0xb0] sm:$0xff]
    %v405 = vld [vmem:[%s2 + $0xb8] sm:$0xff]
    %v406 = vld [vmem:[%s2 + $0xc0] sm:$0xff]
    %v407 = vld [vmem:[%s2 + $0xc8] sm:$0xff]
    %v408 = vld [vmem:[%s2 + $0xd0] sm:$0xff]
    %v409 = vld [vmem:[%s2 + $0xd8] sm:$0xff]
    %v410 = vld [vmem:[%s2 + $0xe0] sm:$0xff]
    %v411 = vld [vmem:[%s2 + $0xe8] sm:$0xff]
    %v412 = vld [vmem:[%s2 + $0xf8] sm:$0x1]
    %v414 = vsel %vm223, %v396, 0
    %416 = vmatprep.subr.mxu0 0.0
    %417 = vmatpush1.msra.mxu0 %v400
    %418 = vmatprep.subr.mxu0 0.0
    %419 = vmatpush1.msra.mxu0 %v401
    %420 = vmatprep.subr.mxu0 0.0
    %421 = vmatpush1.msra.mxu0 %v402
    %422 = vmatprep.subr.mxu0 0.0
    %423 = vmatpush1.msra.mxu0 %v403
    %424 = vmatprep.subr.mxu0 0.0
    %425 = vmatpush1.msra.mxu0 0.0
    %426 = vmatprep.subr.mxu0 0.0
    %427 = vmatpush1.msra.mxu0 0.0
    %428 = vmatprep.subr.mxu0 0.0
    %429 = vmatpush1.msra.mxu0 0.0
    %430 = vmatprep.subr.mxu0 0.0
    %431 = vmatpush1.msra.mxu0 0.0
    %432 = vmatprep.subr.mxu0 0.0
    %433 = vmatpush1.msra.mxu0 0.0
    %434 = vmatprep.subr.mxu0 0.0
    %435 = vmatpush1.msra.mxu0 0.0
    %436 = vmatprep.subr.mxu0 0.0
    %437 = vmatpush1.msra.mxu0 0.0
    %438 = vmatprep.subr.mxu0 0.0
    %439 = vmatpush1.msra.mxu0 0.0
    %440 = vmatprep.subr.mxu0 0.0
    %441 = vmatpush1.msra.mxu0 0.0
    %442 = vmatprep.subr.mxu0 0.0
    %443 = vmatpush1.msra.mxu0 0.0
    %444 = vmatprep.subr.mxu0 0.0
    %445 = vmatpush1.msra.mxu0 0.0
    %446 = vmatprep.subr.mxu0 0.0
    %447 = vmatpush1.msra.mxu0 0.0
    %448 = vmatprep.subr.mxu0 0.0
    %449 = vmatpush1.msra.mxu0 0.0
    %450 = vmatprep.subr.mxu0 0.0
    %451 = vmatpush1.msra.mxu0 0.0
    %452 = vmatprep.subr.mxu0 0.0
    %453 = vmatpush1.msra.mxu0 0.0
    %454 = vmatprep.subr.mxu0 0.0
    %455 = vmatpush1.msra.mxu0 0.0
    %456 = vmatprep.subr.mxu0 0.0
    %457 = vmatpush1.msra.mxu0 0.0
    %458 = vmatprep.subr.mxu0 0.0
    %459 = vmatpush1.msra.mxu0 0.0
    %460 = vmatprep.subr.mxu0 0.0
    %461 = vmatpush1.msra.mxu0 0.0
    %462 = vmatprep.subr.mxu0 0.0
    %463 = vmatpush1.msra.mxu0 0.0
    %464 = vmatprep.subr.mxu0 0.0
    %465 = vmatpush1.msra.mxu0 0.0
    %466 = vmatprep.subr.mxu0 0.0
    %467 = vmatpush1.msra.mxu0 0.0
    %468 = vmatprep.subr.mxu0 0.0
    %469 = vmatpush1.msra.mxu0 0.0
    %470 = vmatprep.subr.mxu0 0.0
    %471 = vmatpush1.msra.mxu0 0.0
    %472 = vmatprep.subr.mxu0 0.0
    %473 = vmatpush1.msra.mxu0 0.0
    %474 = vmatprep.subr.mxu0 0.0
    %475 = vmatpush1.msra.mxu0 0.0
    %476 = vmatprep.subr.mxu0 0.0
    %477 = vmatpush1.msra.mxu0 0.0
    %478 = vmatprep.subr.mxu0 0.0
    %479 = vmatpush1.msra.mxu0 0.0
    %480 = vmatprep.mubr.f32.mxu0 0.0
    %481 = vmatmul.mubr.f32.gmra.mrb[0].mxu0 %v414
    %v482 = vpop.f32.mrb[0].mxu0
    %v483 = vadd.f32 %v207, %v482
    %v484 = vpop.f32.mrb[0].mxu0
    %485 = vdwg.mxu0
    %v486 = vtanh.pop %v483
    %v487 = vlaneseq
    %v488 = vshrl.u32 %v487, 7
    %v489 = vsub.s32 0, %v488
    %v490 = vrot.slane %v412, %v489
    %v492 = vsel %vm302, %v486, 0
    %494 = vmatprep.subr.mxu0 0.0
    %495 = vmatpush1.msra.mxu0 %v404
    %496 = vmatprep.subr.mxu0 0.0
    %497 = vmatpush1.msra.mxu0 %v405
    %498 = vmatprep.subr.mxu0 0.0
    %499 = vmatpush1.msra.mxu0 %v406
    %500 = vmatprep.subr.mxu0 0.0
    %501 = vmatpush1.msra.mxu0 %v407
    %502 = vmatprep.subr.mxu0 0.0
    %503 = vmatpush1.msra.mxu0 %v408
    %504 = vmatprep.subr.mxu0 0.0
    %505 = vmatpush1.msra.mxu0 %v409
    %506 = vmatprep.subr.mxu0 0.0
    %507 = vmatpush1.msra.mxu0 %v410
    %508 = vmatprep.subr.mxu0 0.0
    %509 = vmatpush1.msra.mxu0 %v411
    %510 = vmatprep.subr.mxu0 0.0
    %511 = vmatpush1.msra.mxu0 0.0
    %512 = vmatprep.subr.mxu0 0.0
    %513 = vmatpush1.msra.mxu0 0.0
    %514 = vmatprep.subr.mxu0 0.0
    %515 = vmatpush1.msra.mxu0 0.0
    %516 = vmatprep.subr.mxu0 0.0
    %517 = vmatpush1.msra.mxu0 0.0
    %518 = vmatprep.subr.mxu0 0.0
    %519 = vmatpush1.msra.mxu0 0.0
    %520 = vmatprep.subr.mxu0 0.0
    %521 = vmatpush1.msra.mxu0 0.0
    %522 = vmatprep.subr.mxu0 0.0
    %523 = vmatpush1.msra.mxu0 0.0
    %524 = vmatprep.subr.mxu0 0.0
    %525 = vmatpush1.msra.mxu0 0.0
    %526 = vmatprep.subr.mxu0 0.0
    %527 = vmatpush1.msra.mxu0 0.0
    %528 = vmatprep.subr.mxu0 0.0
    %529 = vmatpush1.msra.mxu0 0.0
    %530 = vmatprep.subr.mxu0 0.0
    %531 = vmatpush1.msra.mxu0 0.0
    %532 = vmatprep.subr.mxu0 0.0
    %533 = vmatpush1.msra.mxu0 0.0
    %534 = vmatprep.subr.mxu0 0.0
    %535 = vmatpush1.msra.mxu0 0.0
    %536 = vmatprep.subr.mxu0 0.0
    %537 = vmatpush1.msra.mxu0 0.0
    %538 = vmatprep.subr.mxu0 0.0
    %539 = vmatpush1.msra.mxu0 0.0
    %540 = vmatprep.subr.mxu0 0.0
    %541 = vmatpush1.msra.mxu0 0.0
    %542 = vmatprep.subr.mxu0 0.0
    %543 = vmatpush1.msra.mxu0 0.0
    %544 = vmatprep.subr.mxu0 0.0
    %545 = vmatpush1.msra.mxu0 0.0
    %546 = vmatprep.subr.mxu0 0.0
    %547 = vmatpush1.msra.mxu0 0.0
    %548 = vmatprep.subr.mxu0 0.0
    %549 = vmatpush1.msra.mxu0 0.0
    %550 = vmatprep.subr.mxu0 0.0
    %551 = vmatpush1.msra.mxu0 0.0
    %552 = vmatprep.subr.mxu0 0.0
    %553 = vmatpush1.msra.mxu0 0.0
    %554 = vmatprep.subr.mxu0 0.0
    %555 = vmatpush1.msra.mxu0 0.0
    %556 = vmatprep.subr.mxu0 0.0
    %557 = vmatpush1.msra.mxu0 0.0
    %558 = vmatprep.mubr.f32.mxu0 0.0
    %559 = vmatmul.mubr.f32.gmra.mrb[0].mxu0 %v492
    %v560 = vpop.f32.mrb[0].mxu0
    %v561 = vadd.f32 %v490, %v560
    %v562 = vpop.f32.mrb[0].mxu0
    %563 = vdwg.mxu0
    %564 = vset.pattern.permute.xlu0 1
    %565 = vperm.xlu0 %564, %v46
    %v566 = vpop.permute.xlu0 %565
    %v568 = vmul.f32 %v561, %v566
    %v569 = vtanh.pop %v568
    %570 = vset.pattern.permute.xlu0 1
    %571 = vperm.xlu0 %570, %v43
    %v572 = vpop.permute.xlu0 %571
    %v574 = vmul.f32 %v569, %v572
    %v575 = vmul.f32 %v574, 1.442695
    %v576 = vpow.pop %v575
    %v577 = vmul.f32 %v39, %v576
    %579 = vrot.lane.b32.xlu0 %v561, 96
    %v580 = vpop.permute.xlu0 %579
    %v582 = vadd.f32 %v577, %v580
    %v583 = vsel %vm223, %v574, 0.0
    %584 = vadd.xlane.f32.xlu0 %v583
    %v585 = vpop.xlane.xlu0 %584
    %v586 = vadd.f32 %v399, %v585
    %587 = vst.msk [vmem:[#allocation2] sm:$0xff] %vm223, %v582
    %588 = vst.msk [vmem:[#allocation4] sm:$0xff] %vm223, %v396
    %v589 = vld [vmem:[%s8] sm:$0xff]
    %v590 = vadd.f32 %v589, %v586
    %vm591 = vcmask 7168
    %592 = vst.msk [vmem:[%s8] sm:$0xff] %vm591, %v590
    // Predicated region
    $region30: #{tpu_custom_call.1} parent=1 // pred_check
      _
    $region31: #{tpu_custom_call.1} parent=1 // pred_check_branch
      %594 = sbr.rel (0) target = $region33
    $region32: #{tpu_custom_call.1} parent=1 // pred_region
      %s596 = ssub.s32 128, 128
      %597 = vsyncadd [#allocation3], %s596
      %s599 = sshll.u32 [#allocation2], 4
      %s600 = int_to_ptr.vmem [resolvable:$true] %s599
      %602 = dma.vmem_to_hbm [thread:$0]  %s600, 128, %s6, [#allocation3]
    $region33: #{tpu_custom_call.1} parent=1 // pred_fallthru
      _
    // Predicated region
    $region34: #{tpu_custom_call.1} parent=1 // pred_check
      _
    $region35: #{tpu_custom_call.1} parent=1 // pred_check_branch
      %604 = sbr.rel (0) target = $region37
    $region36: #{tpu_custom_call.1} parent=1 // pred_region
      %s606 = ssub.s32 128, 128
      %607 = vsyncadd [#allocation5], %s606
      %s609 = sshll.u32 [#allocation4], 4
      %s610 = int_to_ptr.vmem [resolvable:$true] %s609
      %612 = dma.vmem_to_hbm [thread:$0]  %s610, 128, %s7, [#allocation5]
    $region37: #{tpu_custom_call.1} parent=1 // pred_fallthru
      _
    // Predicated region
    $region38: #{tpu_custom_call.1} parent=1 // pred_check
      _
    $region39: #{tpu_custom_call.1} parent=1 // pred_check_branch
      %614 = sbr.rel (0) target = $region41
    $region40: #{tpu_custom_call.1} parent=1 // pred_region
      _
    $region41: #{tpu_custom_call.1} parent=1 // pred_fallthru
      _
    // Predicated region
    $region42: #{tpu_custom_call.1} parent=1 // pred_check
      _
    $region43: #{tpu_custom_call.1} parent=1 // pred_check_branch
      %616 = sbr.rel (0) target = $region45
    $region44: #{tpu_custom_call.1} parent=1 // pred_region
      %617 = dma.done [#allocation3], 128
    $region45: #{tpu_custom_call.1} parent=1 // pred_fallthru
      _
    // Predicated region
    $region46: #{tpu_custom_call.1} parent=1 // pred_check
      _
    $region47: #{tpu_custom_call.1} parent=1 // pred_check_branch
      %619 = sbr.rel (0) target = $region49
    $region48: #{tpu_custom_call.1} parent=1 // pred_region
      %620 = dma.done [#allocation5], 128
    $region49: #{tpu_custom_call.1} parent=1 // pred_fallthru
      _
    // Predicated region
    $region50: #{tpu_custom_call.1} parent=1 // pred_check
      _
    $region51: #{tpu_custom_call.1} parent=1 // pred_check_branch
      %622 = sbr.rel (0) target = $region53
    $region52: #{tpu_custom_call.1} parent=1 // pred_region
      _
    $region53: #{tpu_custom_call.1} parent=1 // pred_fallthru
      _
    %623 = vsyncpa [#allocation3], 1
    %624 = vsyncpa [#allocation5], 1

</llo_original>
